<compile_context>
chip_gen: v5e
topology: v5e:2x2
jax: 0.10.0
libtpu: 0.0.40
codegen_flags: <defaults>
</compile_context>

<pallas_src>
import functools
from typing import NamedTuple, Optional

import jax
import jax.numpy as jnp
from jax.experimental import pallas as pl
from jax.experimental.pallas import tpu as pltpu

HOUR_SIZE = 24
DAY_SIZE = 32
MONTH_SIZE = 13
K_PAD = 128  # combined vocab 24 + 32 + 13 = 69 rows, padded to one MXU K tile

# (x column, vocab size, row offset in combined table), ordered month, day, hour
# (month is always present; day if F > 1; hour if F > 2 -- matches the module).
_FEATURES = (
    (0, MONTH_SIZE, HOUR_SIZE + DAY_SIZE),  # month -> rows [56, 69)
    (1, DAY_SIZE, HOUR_SIZE),               # day   -> rows [24, 56)
    (2, HOUR_SIZE, 0),                      # hour  -> rows [0, 24)
)


class TemporalEmbeddingTables(NamedTuple):
    packed: Optional[jnp.ndarray]  # (g, K_PAD, g*D) f32 lane-banded table
    combined: jnp.ndarray          # (69, D) f32 for the pure-JAX fallback path
    group: int                     # rows packed per 128-lane output row (g)
    time_dim: int                  # D


def make_packed_tables(hour_tbl, day_tbl, month_tbl) -> TemporalEmbeddingTables:
    """Build the kernel tables once (hoisted out of the per-call path)."""
    D = month_tbl.shape[1]
    combined = jnp.concatenate(
        [hour_tbl, day_tbl, month_tbl], axis=0).astype(jnp.float32)  # (69, D)
    if D % 128 == 0:
        g = 1
    elif 128 % D == 0:
        g = 128 // D
    else:
        # TODO(synk): time_dim that neither divides nor is a multiple of 128
        # uses the pure-JAX gather path (no lane-dense packing possible).
        return TemporalEmbeddingTables(None, combined, 1, D)
    lanes = g * D
    packed = jnp.zeros((g, K_PAD, lanes), jnp.float32)
    for q in range(g):
        packed = packed.at[q, :combined.shape[0], q * D:(q + 1) * D].set(combined)
    return TemporalEmbeddingTables(packed, combined, g, D)


def _temporal_embedding_kernel(x_ref, tbl_ref, out_ref, *, num_features, group):
    # x_ref:   (tnp, group * num_features) f32 raw time fractions (g rows packed)
    # tbl_ref: (group, K_PAD, lanes) f32 lane-banded combined table (resident)
    # out_ref: (tnp, lanes) f32, lanes = group * time_dim (multiple of 128)
    tnp = out_ref.shape[0]
    xv = x_ref[...]
    # Single hoisted iota shared by every compare.
    iota = jax.lax.broadcasted_iota(jnp.int32, (tnp, K_PAD), 1)

    acc = None
    for q in range(group):  # static unroll
        onehot = None
        for col, size, row_off in _FEATURES[:num_features]:
            c = q * num_features + col
            frac = xv[:, c:c + 1]                                   # (tnp, 1)
            idx = jnp.clip((frac * size).astype(jnp.int32), 0, size - 1) + row_off
            term = (iota == idx).astype(jnp.float32)                # (tnp, 128)
            onehot = term if onehot is None else onehot + term
        # Aligned (tnp,128) x (128, lanes) MXU matmul; disjoint row bands make
        # the 3-hot matmul exactly hour + day + month lookup for group q.
        part = jnp.dot(onehot, tbl_ref[q], preferred_element_type=jnp.float32)
        acc = part if acc is None else acc + part
    out_ref[...] = acc


def _round_up(a, b):
    return ((a + b - 1) // b) * b


def _temporal_embedding_jax(x, tables):
    comb = tables.combined
    F = x.shape[1]
    out = None
    for col, size, row_off in _FEATURES[:F]:
        idx = jnp.clip((x[:, col] * size).astype(jnp.int32), 0, size - 1) + row_off
        term = comb[idx]
        out = term if out is None else out + term
    return out


def temporal_embedding(x, tables: TemporalEmbeddingTables, *, tn=8192,
                       min_kernel_rows=2048, interpret=False):
    """Forward pass of TemporalEmbedding.  x: (N, F) with F in {1, 2, 3}."""
    N, F = x.shape
    assert 1 <= F <= 3, "module supports 1-3 time features (month, day, hour)"
    D, g = tables.time_dim, tables.group

    # Tiny inputs (or unsupported D) -> launch overhead dominates; use JAX.
    if tables.packed is None or N < min_kernel_rows:
        return _temporal_embedding_jax(x.astype(jnp.float32), tables)

    lanes = g * D
    x = x.astype(jnp.float32)

    # Row tiling: large tiles, but keep >= 2 grid steps for mid-size N so the
    # ("parallel",) axis can shard across both v7x TensorCores.
    align = 8 * g  # packed-row tile (tn // g) must be a multiple of 8
    tn = max(align, min(_round_up(tn, align), _round_up(pl.cdiv(N, 2), align)))
    N_pad = _round_up(N, tn)
    if N_pad != N:
        x = jnp.pad(x, ((0, N_pad - N), (0, 0)))   # padded rows -> valid index 0
    x_packed = x.reshape(N_pad // g, g * F)        # free row-major reshape

    tnp = tn // g
    grid = (N_pad // tn,)
    kernel = functools.partial(_temporal_embedding_kernel,
                               num_features=F, group=g)
    cost = pl.CostEstimate(
        flops=2 * N_pad * K_PAD * lanes,
        transcendentals=0,
        bytes_accessed=(x_packed.size + tables.packed.size
                        + (N_pad // g) * lanes) * 4,
    )

    out = pl.pallas_call(
        kernel,
        out_shape=jax.ShapeDtypeStruct((N_pad // g, lanes), jnp.float32),
        grid_spec=pltpu.PrefetchScalarGridSpec(
            num_scalar_prefetch=0,
            grid=grid,
            in_specs=[
                pl.BlockSpec((tnp, g * F), lambda i: (i, 0)),
                pl.BlockSpec((g, K_PAD, lanes), lambda i: (0, 0, 0)),  # resident
            ],
            out_specs=pl.BlockSpec((tnp, lanes), lambda i: (i, 0)),
        ),
        compiler_params=pltpu.CompilerParams(
            dimension_semantics=("parallel",),
            vmem_limit_bytes=32 * 1024 * 1024),
        cost_estimate=cost,
        interpret=interpret,
    )(x_packed, tables.packed)

    # (N_pad/g, g*D) row-major == (N_pad, D); both ops are no-ops when aligned.
    return out.reshape(N_pad, D)[:N]


def reference(x, hour_tbl, day_tbl, month_tbl):
    F = x.shape[1]
    out = month_tbl[(x[:, 0] * MONTH_SIZE).astype(jnp.int32)]
    if F > 1:
        out = out + day_tbl[(x[:, 1] * DAY_SIZE).astype(jnp.int32)]
    if F > 2:
        out = out + hour_tbl[(x[:, 2] * HOUR_SIZE).astype(jnp.int32)]
    return out


if __name__ == "__main__":
    key = jax.random.PRNGKey(0)
    k_x, k_h, k_d, k_m = jax.random.split(key, 4)

    N, F, time_dim = 96, 3, 32  # small demo shapes; N not a tile multiple

    # Normalized time features in [0, 1), like the module expects.
    x = jax.random.uniform(k_x, (N, F), jnp.float32, 0.0, 0.999)

    # Deterministic synthetic embedding tables (nn.Embedding weight shapes).
    hour_tbl = jax.random.normal(k_h, (HOUR_SIZE, time_dim), jnp.float32)
    day_tbl = jax.random.normal(k_d, (DAY_SIZE, time_dim), jnp.float32)
    month_tbl = jax.random.normal(k_m, (MONTH_SIZE, time_dim), jnp.float32)

    # Build the packed table once (hoisted out of the per-call path).
    tables = make_packed_tables(hour_tbl, day_tbl, month_tbl)

    # Full (month, day, hour) case through the Pallas kernel.
    out = jax.block_until_ready(temporal_embedding(x, tables, min_kernel_rows=0))
    ref = reference(x, hour_tbl, day_tbl, month_tbl)
    assert out.shape == (N, time_dim)
    assert jnp.allclose(out, ref, atol=1e-5, rtol=1e-5)

    # f == 2 case (month + day only), still through the kernel.
    x2 = x[:, :2]
    out2 = jax.block_until_ready(temporal_embedding(x2, tables, min_kernel_rows=0))
    ref2 = reference(x2, hour_tbl, day_tbl, month_tbl)
    assert jnp.allclose(out2, ref2, atol=1e-5, rtol=1e-5)

    # Small-N dispatch (pure-JAX path) agrees as well.
    out3 = jax.block_until_ready(temporal_embedding(x, tables))
    assert jnp.allclose(out3, ref, atol=1e-5, rtol=1e-5)

    print("KERNEL_OK")
</pallas_src>

<mosaic_0001>
module attributes {stable_mosaic.version = 11 : i64} {
  func.func @_temporal_embedding_kernel(%arg0: i32, %arg1: memref<16x12xf32, #tpu.memory_space<vmem>>, %arg2: memref<4x128x128xf32, #tpu.memory_space<vmem>>, %arg3: memref<16x128xf32, #tpu.memory_space<vmem>>) attributes {dimension_semantics = [#tpu.dimension_semantics<parallel>], iteration_bounds = array<i64: 2>, scalar_prefetch = 0 : i64, scratch_operands = 0 : i64, tpu.core_type = #tpu.core_type<tc>, window_params = [{transform_indices = @transform_0, window_bounds = array<i64: 16, 12>}, {pipeline_mode = #tpu.pipeline_mode<synchronous>, transform_indices = @transform_1, window_bounds = array<i64: 4, 128, 128>}, {transform_indices = @transform_2, window_bounds = array<i64: 16, 128>}]} {
    %c0 = arith.constant 0 : index
    %c0_0 = arith.constant 0 : index
    %0 = vector.load %arg1[%c0, %c0_0] : memref<16x12xf32, #tpu.memory_space<vmem>>, vector<16x12xf32>
    %1 = tpu.iota {dimensions = array<i32: 1>} : vector<16x128xi32>
    %2 = vector.extract_strided_slice %0 {offsets = [0, 0], sizes = [16, 1], strides = [1, 1]} : vector<16x12xf32> to vector<16x1xf32>
    %cst = arith.constant 1.300000e+01 : f32
    %3 = vector.broadcast %cst : f32 to vector<16x1xf32>
    %4 = arith.mulf %2, %3 : vector<16x1xf32>
    %5 = arith.fptosi %4 : vector<16x1xf32> to vector<16x1xi32>
    %c0_i32 = arith.constant 0 : i32
    %c12_i32 = arith.constant 12 : i32
    %6 = vector.broadcast %c0_i32 : i32 to vector<16x1xi32>
    %7 = arith.maxsi %6, %5 : vector<16x1xi32>
    %8 = vector.broadcast %c12_i32 : i32 to vector<16x1xi32>
    %9 = arith.minsi %8, %7 : vector<16x1xi32>
    %c56_i32 = arith.constant 56 : i32
    %10 = vector.broadcast %c56_i32 : i32 to vector<16x1xi32>
    %11 = arith.addi %9, %10 : vector<16x1xi32>
    %12 = vector.broadcast %11 : vector<16x1xi32> to vector<16x128xi32>
    %13 = arith.cmpi eq, %1, %12 : vector<16x128xi32>
    %14 = arith.extui %13 : vector<16x128xi1> to vector<16x128xi32>
    %15 = arith.sitofp %14 : vector<16x128xi32> to vector<16x128xf32>
    %16 = vector.extract_strided_slice %0 {offsets = [0, 1], sizes = [16, 1], strides = [1, 1]} : vector<16x12xf32> to vector<16x1xf32>
    %cst_1 = arith.constant 3.200000e+01 : f32
    %17 = vector.broadcast %cst_1 : f32 to vector<16x1xf32>
    %18 = arith.mulf %16, %17 : vector<16x1xf32>
    %19 = arith.fptosi %18 : vector<16x1xf32> to vector<16x1xi32>
    %c0_i32_2 = arith.constant 0 : i32
    %c31_i32 = arith.constant 31 : i32
    %20 = vector.broadcast %c0_i32_2 : i32 to vector<16x1xi32>
    %21 = arith.maxsi %20, %19 : vector<16x1xi32>
    %22 = vector.broadcast %c31_i32 : i32 to vector<16x1xi32>
    %23 = arith.minsi %22, %21 : vector<16x1xi32>
    %c24_i32 = arith.constant 24 : i32
    %24 = vector.broadcast %c24_i32 : i32 to vector<16x1xi32>
    %25 = arith.addi %23, %24 : vector<16x1xi32>
    %26 = vector.broadcast %25 : vector<16x1xi32> to vector<16x128xi32>
    %27 = arith.cmpi eq, %1, %26 : vector<16x128xi32>
    %28 = arith.extui %27 : vector<16x128xi1> to vector<16x128xi32>
    %29 = arith.sitofp %28 : vector<16x128xi32> to vector<16x128xf32>
    %30 = arith.addf %15, %29 : vector<16x128xf32>
    %31 = vector.extract_strided_slice %0 {offsets = [0, 2], sizes = [16, 1], strides = [1, 1]} : vector<16x12xf32> to vector<16x1xf32>
    %cst_3 = arith.constant 2.400000e+01 : f32
    %32 = vector.broadcast %cst_3 : f32 to vector<16x1xf32>
    %33 = arith.mulf %31, %32 : vector<16x1xf32>
    %34 = arith.fptosi %33 : vector<16x1xf32> to vector<16x1xi32>
    %c0_i32_4 = arith.constant 0 : i32
    %c23_i32 = arith.constant 23 : i32
    %35 = vector.broadcast %c0_i32_4 : i32 to vector<16x1xi32>
    %36 = arith.maxsi %35, %34 : vector<16x1xi32>
    %37 = vector.broadcast %c23_i32 : i32 to vector<16x1xi32>
    %38 = arith.minsi %37, %36 : vector<16x1xi32>
    %c0_i32_5 = arith.constant 0 : i32
    %39 = vector.broadcast %c0_i32_5 : i32 to vector<16x1xi32>
    %40 = arith.addi %38, %39 : vector<16x1xi32>
    %41 = vector.broadcast %40 : vector<16x1xi32> to vector<16x128xi32>
    %42 = arith.cmpi eq, %1, %41 : vector<16x128xi32>
    %43 = arith.extui %42 : vector<16x128xi1> to vector<16x128xi32>
    %44 = arith.sitofp %43 : vector<16x128xi32> to vector<16x128xf32>
    %45 = arith.addf %30, %44 : vector<16x128xf32>
    %c0_6 = arith.constant 0 : index
    %c0_7 = arith.constant 0 : index
    %c0_8 = arith.constant 0 : index
    %46 = vector.load %arg2[%c0_6, %c0_7, %c0_8] : memref<4x128x128xf32, #tpu.memory_space<vmem>>, vector<1x128x128xf32>
    %47 = vector.shape_cast %46 : vector<1x128x128xf32> to vector<128x128xf32>
    %cst_9 = arith.constant dense<0.000000e+00> : vector<16x128xf32>
    %48 = tpu.matmul %45, %47, %cst_9 {dimension_numbers = #tpu.dot_dimension_numbers<[1], [0], [0], [1], [0, 0, 1, 1], [], []>} : vector<16x128xf32>, vector<128x128xf32>, vector<16x128xf32> -> vector<16x128xf32>
    %49 = vector.extract_strided_slice %0 {offsets = [0, 3], sizes = [16, 1], strides = [1, 1]} : vector<16x12xf32> to vector<16x1xf32>
    %cst_10 = arith.constant 1.300000e+01 : f32
    %50 = vector.broadcast %cst_10 : f32 to vector<16x1xf32>
    %51 = arith.mulf %49, %50 : vector<16x1xf32>
    %52 = arith.fptosi %51 : vector<16x1xf32> to vector<16x1xi32>
    %c0_i32_11 = arith.constant 0 : i32
    %c12_i32_12 = arith.constant 12 : i32
    %53 = vector.broadcast %c0_i32_11 : i32 to vector<16x1xi32>
    %54 = arith.maxsi %53, %52 : vector<16x1xi32>
    %55 = vector.broadcast %c12_i32_12 : i32 to vector<16x1xi32>
    %56 = arith.minsi %55, %54 : vector<16x1xi32>
    %c56_i32_13 = arith.constant 56 : i32
    %57 = vector.broadcast %c56_i32_13 : i32 to vector<16x1xi32>
    %58 = arith.addi %56, %57 : vector<16x1xi32>
    %59 = vector.broadcast %58 : vector<16x1xi32> to vector<16x128xi32>
    %60 = arith.cmpi eq, %1, %59 : vector<16x128xi32>
    %61 = arith.extui %60 : vector<16x128xi1> to vector<16x128xi32>
    %62 = arith.sitofp %61 : vector<16x128xi32> to vector<16x128xf32>
    %63 = vector.extract_strided_slice %0 {offsets = [0, 4], sizes = [16, 1], strides = [1, 1]} : vector<16x12xf32> to vector<16x1xf32>
    %cst_14 = arith.constant 3.200000e+01 : f32
    %64 = vector.broadcast %cst_14 : f32 to vector<16x1xf32>
    %65 = arith.mulf %63, %64 : vector<16x1xf32>
    %66 = arith.fptosi %65 : vector<16x1xf32> to vector<16x1xi32>
    %c0_i32_15 = arith.constant 0 : i32
    %c31_i32_16 = arith.constant 31 : i32
    %67 = vector.broadcast %c0_i32_15 : i32 to vector<16x1xi32>
    %68 = arith.maxsi %67, %66 : vector<16x1xi32>
    %69 = vector.broadcast %c31_i32_16 : i32 to vector<16x1xi32>
    %70 = arith.minsi %69, %68 : vector<16x1xi32>
    %c24_i32_17 = arith.constant 24 : i32
    %71 = vector.broadcast %c24_i32_17 : i32 to vector<16x1xi32>
    %72 = arith.addi %70, %71 : vector<16x1xi32>
    %73 = vector.broadcast %72 : vector<16x1xi32> to vector<16x128xi32>
    %74 = arith.cmpi eq, %1, %73 : vector<16x128xi32>
    %75 = arith.extui %74 : vector<16x128xi1> to vector<16x128xi32>
    %76 = arith.sitofp %75 : vector<16x128xi32> to vector<16x128xf32>
    %77 = arith.addf %62, %76 : vector<16x128xf32>
    %78 = vector.extract_strided_slice %0 {offsets = [0, 5], sizes = [16, 1], strides = [1, 1]} : vector<16x12xf32> to vector<16x1xf32>
    %cst_18 = arith.constant 2.400000e+01 : f32
    %79 = vector.broadcast %cst_18 : f32 to vector<16x1xf32>
    %80 = arith.mulf %78, %79 : vector<16x1xf32>
    %81 = arith.fptosi %80 : vector<16x1xf32> to vector<16x1xi32>
    %c0_i32_19 = arith.constant 0 : i32
    %c23_i32_20 = arith.constant 23 : i32
    %82 = vector.broadcast %c0_i32_19 : i32 to vector<16x1xi32>
    %83 = arith.maxsi %82, %81 : vector<16x1xi32>
    %84 = vector.broadcast %c23_i32_20 : i32 to vector<16x1xi32>
    %85 = arith.minsi %84, %83 : vector<16x1xi32>
    %c0_i32_21 = arith.constant 0 : i32
    %86 = vector.broadcast %c0_i32_21 : i32 to vector<16x1xi32>
    %87 = arith.addi %85, %86 : vector<16x1xi32>
    %88 = vector.broadcast %87 : vector<16x1xi32> to vector<16x128xi32>
    %89 = arith.cmpi eq, %1, %88 : vector<16x128xi32>
    %90 = arith.extui %89 : vector<16x128xi1> to vector<16x128xi32>
    %91 = arith.sitofp %90 : vector<16x128xi32> to vector<16x128xf32>
    %92 = arith.addf %77, %91 : vector<16x128xf32>
    %c1 = arith.constant 1 : index
    %c0_22 = arith.constant 0 : index
    %c0_23 = arith.constant 0 : index
    %93 = vector.load %arg2[%c1, %c0_22, %c0_23] : memref<4x128x128xf32, #tpu.memory_space<vmem>>, vector<1x128x128xf32>
    %94 = vector.shape_cast %93 : vector<1x128x128xf32> to vector<128x128xf32>
    %cst_24 = arith.constant dense<0.000000e+00> : vector<16x128xf32>
    %95 = tpu.matmul %92, %94, %cst_24 {dimension_numbers = #tpu.dot_dimension_numbers<[1], [0], [0], [1], [0, 0, 1, 1], [], []>} : vector<16x128xf32>, vector<128x128xf32>, vector<16x128xf32> -> vector<16x128xf32>
    %96 = arith.addf %48, %95 : vector<16x128xf32>
    %97 = vector.extract_strided_slice %0 {offsets = [0, 6], sizes = [16, 1], strides = [1, 1]} : vector<16x12xf32> to vector<16x1xf32>
    %cst_25 = arith.constant 1.300000e+01 : f32
    %98 = vector.broadcast %cst_25 : f32 to vector<16x1xf32>
    %99 = arith.mulf %97, %98 : vector<16x1xf32>
    %100 = arith.fptosi %99 : vector<16x1xf32> to vector<16x1xi32>
    %c0_i32_26 = arith.constant 0 : i32
    %c12_i32_27 = arith.constant 12 : i32
    %101 = vector.broadcast %c0_i32_26 : i32 to vector<16x1xi32>
    %102 = arith.maxsi %101, %100 : vector<16x1xi32>
    %103 = vector.broadcast %c12_i32_27 : i32 to vector<16x1xi32>
    %104 = arith.minsi %103, %102 : vector<16x1xi32>
    %c56_i32_28 = arith.constant 56 : i32
    %105 = vector.broadcast %c56_i32_28 : i32 to vector<16x1xi32>
    %106 = arith.addi %104, %105 : vector<16x1xi32>
    %107 = vector.broadcast %106 : vector<16x1xi32> to vector<16x128xi32>
    %108 = arith.cmpi eq, %1, %107 : vector<16x128xi32>
    %109 = arith.extui %108 : vector<16x128xi1> to vector<16x128xi32>
    %110 = arith.sitofp %109 : vector<16x128xi32> to vector<16x128xf32>
    %111 = vector.extract_strided_slice %0 {offsets = [0, 7], sizes = [16, 1], strides = [1, 1]} : vector<16x12xf32> to vector<16x1xf32>
    %cst_29 = arith.constant 3.200000e+01 : f32
    %112 = vector.broadcast %cst_29 : f32 to vector<16x1xf32>
    %113 = arith.mulf %111, %112 : vector<16x1xf32>
    %114 = arith.fptosi %113 : vector<16x1xf32> to vector<16x1xi32>
    %c0_i32_30 = arith.constant 0 : i32
    %c31_i32_31 = arith.constant 31 : i32
    %115 = vector.broadcast %c0_i32_30 : i32 to vector<16x1xi32>
    %116 = arith.maxsi %115, %114 : vector<16x1xi32>
    %117 = vector.broadcast %c31_i32_31 : i32 to vector<16x1xi32>
    %118 = arith.minsi %117, %116 : vector<16x1xi32>
    %c24_i32_32 = arith.constant 24 : i32
    %119 = vector.broadcast %c24_i32_32 : i32 to vector<16x1xi32>
    %120 = arith.addi %118, %119 : vector<16x1xi32>
    %121 = vector.broadcast %120 : vector<16x1xi32> to vector<16x128xi32>
    %122 = arith.cmpi eq, %1, %121 : vector<16x128xi32>
    %123 = arith.extui %122 : vector<16x128xi1> to vector<16x128xi32>
    %124 = arith.sitofp %123 : vector<16x128xi32> to vector<16x128xf32>
    %125 = arith.addf %110, %124 : vector<16x128xf32>
    %126 = vector.extract_strided_slice %0 {offsets = [0, 8], sizes = [16, 1], strides = [1, 1]} : vector<16x12xf32> to vector<16x1xf32>
    %cst_33 = arith.constant 2.400000e+01 : f32
    %127 = vector.broadcast %cst_33 : f32 to vector<16x1xf32>
    %128 = arith.mulf %126, %127 : vector<16x1xf32>
    %129 = arith.fptosi %128 : vector<16x1xf32> to vector<16x1xi32>
    %c0_i32_34 = arith.constant 0 : i32
    %c23_i32_35 = arith.constant 23 : i32
    %130 = vector.broadcast %c0_i32_34 : i32 to vector<16x1xi32>
    %131 = arith.maxsi %130, %129 : vector<16x1xi32>
    %132 = vector.broadcast %c23_i32_35 : i32 to vector<16x1xi32>
    %133 = arith.minsi %132, %131 : vector<16x1xi32>
    %c0_i32_36 = arith.constant 0 : i32
    %134 = vector.broadcast %c0_i32_36 : i32 to vector<16x1xi32>
    %135 = arith.addi %133, %134 : vector<16x1xi32>
    %136 = vector.broadcast %135 : vector<16x1xi32> to vector<16x128xi32>
    %137 = arith.cmpi eq, %1, %136 : vector<16x128xi32>
    %138 = arith.extui %137 : vector<16x128xi1> to vector<16x128xi32>
    %139 = arith.sitofp %138 : vector<16x128xi32> to vector<16x128xf32>
    %140 = arith.addf %125, %139 : vector<16x128xf32>
    %c2 = arith.constant 2 : index
    %c0_37 = arith.constant 0 : index
    %c0_38 = arith.constant 0 : index
    %141 = vector.load %arg2[%c2, %c0_37, %c0_38] : memref<4x128x128xf32, #tpu.memory_space<vmem>>, vector<1x128x128xf32>
    %142 = vector.shape_cast %141 : vector<1x128x128xf32> to vector<128x128xf32>
    %cst_39 = arith.constant dense<0.000000e+00> : vector<16x128xf32>
    %143 = tpu.matmul %140, %142, %cst_39 {dimension_numbers = #tpu.dot_dimension_numbers<[1], [0], [0], [1], [0, 0, 1, 1], [], []>} : vector<16x128xf32>, vector<128x128xf32>, vector<16x128xf32> -> vector<16x128xf32>
    %144 = arith.addf %96, %143 : vector<16x128xf32>
    %145 = vector.extract_strided_slice %0 {offsets = [0, 9], sizes = [16, 1], strides = [1, 1]} : vector<16x12xf32> to vector<16x1xf32>
    %cst_40 = arith.constant 1.300000e+01 : f32
    %146 = vector.broadcast %cst_40 : f32 to vector<16x1xf32>
    %147 = arith.mulf %145, %146 : vector<16x1xf32>
    %148 = arith.fptosi %147 : vector<16x1xf32> to vector<16x1xi32>
    %c0_i32_41 = arith.constant 0 : i32
    %c12_i32_42 = arith.constant 12 : i32
    %149 = vector.broadcast %c0_i32_41 : i32 to vector<16x1xi32>
    %150 = arith.maxsi %149, %148 : vector<16x1xi32>
    %151 = vector.broadcast %c12_i32_42 : i32 to vector<16x1xi32>
    %152 = arith.minsi %151, %150 : vector<16x1xi32>
    %c56_i32_43 = arith.constant 56 : i32
    %153 = vector.broadcast %c56_i32_43 : i32 to vector<16x1xi32>
    %154 = arith.addi %152, %153 : vector<16x1xi32>
    %155 = vector.broadcast %154 : vector<16x1xi32> to vector<16x128xi32>
    %156 = arith.cmpi eq, %1, %155 : vector<16x128xi32>
    %157 = arith.extui %156 : vector<16x128xi1> to vector<16x128xi32>
    %158 = arith.sitofp %157 : vector<16x128xi32> to vector<16x128xf32>
    %159 = vector.extract_strided_slice %0 {offsets = [0, 10], sizes = [16, 1], strides = [1, 1]} : vector<16x12xf32> to vector<16x1xf32>
    %cst_44 = arith.constant 3.200000e+01 : f32
    %160 = vector.broadcast %cst_44 : f32 to vector<16x1xf32>
    %161 = arith.mulf %159, %160 : vector<16x1xf32>
    %162 = arith.fptosi %161 : vector<16x1xf32> to vector<16x1xi32>
    %c0_i32_45 = arith.constant 0 : i32
    %c31_i32_46 = arith.constant 31 : i32
    %163 = vector.broadcast %c0_i32_45 : i32 to vector<16x1xi32>
    %164 = arith.maxsi %163, %162 : vector<16x1xi32>
    %165 = vector.broadcast %c31_i32_46 : i32 to vector<16x1xi32>
    %166 = arith.minsi %165, %164 : vector<16x1xi32>
    %c24_i32_47 = arith.constant 24 : i32
    %167 = vector.broadcast %c24_i32_47 : i32 to vector<16x1xi32>
    %168 = arith.addi %166, %167 : vector<16x1xi32>
    %169 = vector.broadcast %168 : vector<16x1xi32> to vector<16x128xi32>
    %170 = arith.cmpi eq, %1, %169 : vector<16x128xi32>
    %171 = arith.extui %170 : vector<16x128xi1> to vector<16x128xi32>
    %172 = arith.sitofp %171 : vector<16x128xi32> to vector<16x128xf32>
    %173 = arith.addf %158, %172 : vector<16x128xf32>
    %174 = vector.extract_strided_slice %0 {offsets = [0, 11], sizes = [16, 1], strides = [1, 1]} : vector<16x12xf32> to vector<16x1xf32>
    %cst_48 = arith.constant 2.400000e+01 : f32
    %175 = vector.broadcast %cst_48 : f32 to vector<16x1xf32>
    %176 = arith.mulf %174, %175 : vector<16x1xf32>
    %177 = arith.fptosi %176 : vector<16x1xf32> to vector<16x1xi32>
    %c0_i32_49 = arith.constant 0 : i32
    %c23_i32_50 = arith.constant 23 : i32
    %178 = vector.broadcast %c0_i32_49 : i32 to vector<16x1xi32>
    %179 = arith.maxsi %178, %177 : vector<16x1xi32>
    %180 = vector.broadcast %c23_i32_50 : i32 to vector<16x1xi32>
    %181 = arith.minsi %180, %179 : vector<16x1xi32>
    %c0_i32_51 = arith.constant 0 : i32
    %182 = vector.broadcast %c0_i32_51 : i32 to vector<16x1xi32>
    %183 = arith.addi %181, %182 : vector<16x1xi32>
    %184 = vector.broadcast %183 : vector<16x1xi32> to vector<16x128xi32>
    %185 = arith.cmpi eq, %1, %184 : vector<16x128xi32>
    %186 = arith.extui %185 : vector<16x128xi1> to vector<16x128xi32>
    %187 = arith.sitofp %186 : vector<16x128xi32> to vector<16x128xf32>
    %188 = arith.addf %173, %187 : vector<16x128xf32>
    %c3 = arith.constant 3 : index
    %c0_52 = arith.constant 0 : index
    %c0_53 = arith.constant 0 : index
    %189 = vector.load %arg2[%c3, %c0_52, %c0_53] : memref<4x128x128xf32, #tpu.memory_space<vmem>>, vector<1x128x128xf32>
    %190 = vector.shape_cast %189 : vector<1x128x128xf32> to vector<128x128xf32>
    %cst_54 = arith.constant dense<0.000000e+00> : vector<16x128xf32>
    %191 = tpu.matmul %188, %190, %cst_54 {dimension_numbers = #tpu.dot_dimension_numbers<[1], [0], [0], [1], [0, 0, 1, 1], [], []>} : vector<16x128xf32>, vector<128x128xf32>, vector<16x128xf32> -> vector<16x128xf32>
    %192 = arith.addf %144, %191 : vector<16x128xf32>
    %c0_55 = arith.constant 0 : index
    %c0_56 = arith.constant 0 : index
    %193 = vector.load %arg3[%c0_55, %c0_56] : memref<16x128xf32, #tpu.memory_space<vmem>>, vector<16x128xf32>
    tpu.vector_store %arg3[%c0_55, %c0_56], %192 {strides = array<i32>} : memref<16x128xf32, #tpu.memory_space<vmem>>, vector<16x128xf32>,
    return
  }
  func.func @transform_0(%arg0: i32) -> (i32, i32) {
    %c0_i32 = arith.constant 0 : i32
    %c0_i32_0 = arith.constant 0 : i32
    return %arg0, %c0_i32 : i32, i32
  }
  func.func @transform_1(%arg0: i32) -> (i32, i32, i32) {
    %c0_i32 = arith.constant 0 : i32
    %c0_i32_0 = arith.constant 0 : i32
    %c0_i32_1 = arith.constant 0 : i32
    %c0_i32_2 = arith.constant 0 : i32
    return %c0_i32, %c0_i32_0, %c0_i32_1 : i32, i32, i32
  }
  func.func @transform_2(%arg0: i32) -> (i32, i32) {
    %c0_i32 = arith.constant 0 : i32
    %c0_i32_0 = arith.constant 0 : i32
    return %arg0, %c0_i32 : i32, i32
  }
}

</mosaic_0001>

<llo_original>
// kernel: tpu_custom_call.1
$region0: #{tpu_custom_call.1}
  #allocation0 [shape = 'u32[]', space=smem, size = 0x4, offset = 0x4, fixed_abs, tag = 'smem constant byte address 0x4 - core index']
  #allocation1 [shape = 'u32[72,128]{1,0:T(1,128)}', space=vmem, size = 0x9000, scoped, tag = 'internal scratch']
  %s0 = inlined_call_operand.vmem [shape: f32[32,12], index: 0, kind: input, shape index: {}]
  %s1 = inlined_call_operand.hbm [shape: f32[4,128,128], index: 1, kind: input, shape index: {}]
  %s2 = inlined_call_operand.hbm [shape: f32[32,128], index: 2, kind: output, shape index: {}]
  %s3 = sld [smem:[#allocation0]]
  $region45: #{tpu_custom_call.1} parent=0
    _
  %s5 = ssub.s32 1, %s3
  %s6 = scalar_select 0, %s5, %s3
  $region1: #{tpu_custom_call.1} parent=0
    #allocation2 [shape = 'u8[262144]{0}', space=vmem, size = 0x40000, scoped, tag = 'input window, operand 1, single buffered']
    #allocation3 [shape = 's32[2]{0}', space=sflag, size = 0x8, scoped, tag = 'scoped memory for tpu_custom_call.1']
    #allocation4 [shape = 's32[2]{0}', space=sflag, size = 0x8, scoped, tag = 'scoped memory for tpu_custom_call.1']
    #allocation5 [shape = 'u8[16384]{0}', space=vmem, size = 0x4000, scoped, tag = 'output window, operand 0']
    %7 = vsyncpa [#allocation3], 0
    %8 = vsyncpa [#allocation4], 0
    %s9 = scalar_lea.sflag [#allocation4], 1
    %10 = vsyncpa %s9, 0
    loop: start=0, step=1, limit=4
    $region2: #{tpu_custom_call.1} parent=1 // loop_pre_header
      _
    $region3: #{tpu_custom_call.1} parent=1 // loop_header
      %s12 = sphi 0, %s16
      %p13 = scmp.ge.s32.totalorder %s12, 4
      %s22 = sphi 0, %s24
      %s25 = sphi 0, %s22
      %s26 = sphi 0, %s25
      %s42 = sphi 0, %s26
      %s46 = sphi 0, %s46
      %s48 = sphi 0, %s46
      %s49 = sphi 0, %s48
      %s63 = sphi 0, %s49
      %s69 = sphi 0, %s71
      %s72 = sphi 0, %s69
      %s73 = sphi 0, %s72
      %s89 = sphi 0, %s73
    $region4: #{tpu_custom_call.1} parent=1 // loop_header_branch
      %15 = sbr.rel (%p13) target = $region8
    $region5: #{tpu_custom_call.1} parent=1 // loop_body
      %s17 = ssub.s32 %s12, 1
      %s18 = ssub.s32 %s12, 2
      %s19 = sadd.s32 %s12, 1
      %s20 = ssub.s32 %s12, %s19
      %p21 = scmp.eq.s32.totalorder %s20, 0
      %s23 = sadd.s32 %s22, 1
      %s24 = scalar_select %p21, %s22, %s23
      %p27 = pneg %p21
      %p28 = scmp.eq.s32.totalorder %s12, 1
      %p29 = por %p27, %p28
      %p30 = scmp.ne.s32.totalorder %s22, %s25
      %p31 = scmp.eq.s32.totalorder %s12, 0
      %p32 = por %p30, %p31
      %p33 = scmp.ne.s32.totalorder %s22, %s25
      %p34 = scmp.eq.s32.totalorder %s17, 1
      %p35 = por %p33, %p34
      %p36 = scmp.ne.s32.totalorder %s25, %s26
      %p37 = scmp.eq.s32.totalorder %s17, 0
      %p38 = por %p36, %p37
      %p39 = scmp.ne.s32.totalorder %s25, %s26
      %p40 = scmp.eq.s32.totalorder %s18, 1
      %p41 = por %p39, %p40
      %p43 = scmp.ne.s32.totalorder %s26, %s42
      %p44 = scmp.eq.s32.totalorder %s18, 0
      %p45 = por %p43, %p44
      %s47 = sadd.s32 %s46, 1
      %p50 = scmp.eq.s32.totalorder %s12, 1
      %p51 = scmp.ne.s32.totalorder %s46, %s48
      %p52 = scmp.eq.s32.totalorder %s12, 0
      %p53 = por %p51, %p52
      %p54 = scmp.ne.s32.totalorder %s46, %s48
      %p55 = scmp.eq.s32.totalorder %s17, 1
      %p56 = por %p54, %p55
      %p57 = scmp.ne.s32.totalorder %s48, %s49
      %p58 = scmp.eq.s32.totalorder %s17, 0
      %p59 = por %p57, %p58
      %p60 = scmp.ne.s32.totalorder %s48, %s49
      %p61 = scmp.eq.s32.totalorder %s18, 1
      %p62 = por %p60, %p61
      %p64 = scmp.ne.s32.totalorder %s49, %s63
      %p65 = scmp.eq.s32.totalorder %s18, 0
      %p66 = por %p64, %p65
      %s67 = ssub.s32 %s12, %s19
      %p68 = scmp.eq.s32.totalorder %s67, 0
      %s70 = sadd.s32 %s69, 1
      %s71 = scalar_select %p68, %s69, %s70
      %p74 = pneg %p68
      %p75 = scmp.eq.s32.totalorder %s12, 1
      %p76 = por %p74, %p75
      %p77 = scmp.ne.s32.totalorder %s69, %s72
      %p78 = scmp.eq.s32.totalorder %s12, 0
      %p79 = por %p77, %p78
      %p80 = scmp.ne.s32.totalorder %s69, %s72
      %p81 = scmp.eq.s32.totalorder %s17, 1
      %p82 = por %p80, %p81
      %p83 = scmp.ne.s32.totalorder %s72, %s73
      %p84 = scmp.eq.s32.totalorder %s17, 0
      %p85 = por %p83, %p84
      %p86 = scmp.ne.s32.totalorder %s72, %s73
      %p87 = scmp.eq.s32.totalorder %s18, 1
      %p88 = por %p86, %p87
      %p90 = scmp.ne.s32.totalorder %s73, %s89
      %p91 = scmp.eq.s32.totalorder %s18, 0
      %p92 = por %p90, %p91
      %p93 = scmp.le.s32.totalorder 1, %s12
      %p94 = scmp.lt.s32.totalorder %s12, 3
      %p95 = pnand %p93, %p94
      %p96 = pneg %p95
      // Predicated region
      $region9: #{tpu_custom_call.1} parent=5 // pred_check
        _
      $region10: #{tpu_custom_call.1} parent=5 // pred_check_branch
        %98 = sbr.rel (%p95) target = $region12
      $region11: #{tpu_custom_call.1} parent=5 // pred_region
        %s99 = ssub.s32 %s12, 1
        // Predicated region
        $region13: #{tpu_custom_call.1} parent=11 // pred_check
          %p100 = pneg %p59
        $region14: #{tpu_custom_call.1} parent=11 // pred_check_branch
          %102 = sbr.rel (%p100) target = $region16
        $region15: #{tpu_custom_call.1} parent=11 // pred_region
          %104 = vsyncadd [#allocation3], 0
          %s105 = sshll.u32 %s1, 4
          %s106 = int_to_ptr.hbm [resolvable:$true] %s105
          %s107 = sshll.u32 [#allocation2], 4
          %s108 = int_to_ptr.vmem [resolvable:$true] %s107
          %113 = dma.hbm_to_vmem [thread:$0]  %s106, 8192, %s108, [#allocation3], 128, 128, 8
        $region16: #{tpu_custom_call.1} parent=11 // pred_fallthru
          _
      $region12: #{tpu_custom_call.1} parent=5 // pred_fallthru
        _
      %p114 = scmp.lt.s32.totalorder %s12, 2
      // Predicated region
      $region17: #{tpu_custom_call.1} parent=5 // pred_check
        %p115 = pneg %p114
      $region18: #{tpu_custom_call.1} parent=5 // pred_check_branch
        %117 = sbr.rel (%p115) target = $region20
      $region19: #{tpu_custom_call.1} parent=5 // pred_region
        // Predicated region
        $region21: #{tpu_custom_call.1} parent=19 // pred_check
          %p118 = pneg %p32
        $region22: #{tpu_custom_call.1} parent=19 // pred_check_branch
          %120 = sbr.rel (%p118) target = $region24
        $region23: #{tpu_custom_call.1} parent=19 // pred_region
          %s121 = smul.u32 2, %s12
          %p122 = scmp.lt.s32.totalorder %s121, 3
          %s123 = scalar_select %p122, %s121, 3
          %s124 = smul.addr %s123, 8
          %s125 = scalar_lea.vmem %s0, %s124
          %s126 = smul.u32 2, %s12
        $region24: #{tpu_custom_call.1} parent=19 // pred_fallthru
          _
      $region20: #{tpu_custom_call.1} parent=5 // pred_fallthru
        _
      %p127 = scmp.le.s32.totalorder 1, %s12
      %p128 = scmp.lt.s32.totalorder %s12, 3
      %p129 = pnand %p127, %p128
      %p130 = pneg %p129
      // Predicated region
      $region25: #{tpu_custom_call.1} parent=5 // pred_check
        _
      $region26: #{tpu_custom_call.1} parent=5 // pred_check_branch
        %132 = sbr.rel (%p129) target = $region28
      $region27: #{tpu_custom_call.1} parent=5 // pred_region
        %s133 = ssub.s32 %s12, 1
        // Predicated region
        $region29: #{tpu_custom_call.1} parent=27 // pred_check
          %p134 = pneg %p59
        $region30: #{tpu_custom_call.1} parent=27 // pred_check_branch
          %136 = sbr.rel (%p134) target = $region32
        $region31: #{tpu_custom_call.1} parent=27 // pred_region
          %138 = dma.done [#allocation3], 8192
        $region32: #{tpu_custom_call.1} parent=27 // pred_fallthru
          _
        %s139 = smul.u32 2, %s17
        %p140 = scmp.lt.s32.totalorder %s139, 3
        %s141 = scalar_select %p140, %s139, 3
        %s142 = smul.addr %s141, 8
        %s143 = scalar_lea.vmem %s0, %s142
        %p144 = pneg %p38
        %p145 = pneg %p35
        %p146 = pneg %p59
        %p147 = pneg %p56
        %p148 = pneg %p85
        %p149 = pneg %p82
        %s150 = sand.u32 %s72, 1
        %s151 = scalar_lea.sflag [#allocation4], %s150
        %s152 = sand.u32 %s72, 1
        %s153 = smul.addr %s152, 16
        %s154 = scalar_lea.vmem [#allocation5], %s153
        %s155 = smul.u32 2, %s17
        %p156 = scmp.lt.s32.totalorder %s155, 3
        %s157 = scalar_select %p156, %s155, 3
        %s158 = smul.addr %s157, 8
        %s159 = scalar_lea.vmem %s0, %s158
        %s160 = smul.u32 2, %s17
        %s161 = smul.u32 2, %s17
        %v162 = vld [vmem:[%s159] sm:$0xff]
        %v163 = vld [vmem:[%s159 + $0x8] sm:$0xff]
        %v164 = vlaneseq
        %v165 = vand.u32 %v164, 127
        %v166 = vmul.f32 %v162, 13.0
        %v167 = vmul.f32 %v163, 13.0
        %v168 = vcvt.f32.s32.to.zero.pseudo %v166
        %v169 = vcvt.f32.s32.to.zero.pseudo %v167
        %vm170 = vcmp.gt.s32.totalorder %v168, 0
        %v171 = vsel %vm170, %v168, 0
        %vm172 = vcmp.gt.s32.totalorder %v169, 0
        %v173 = vsel %vm172, %v169, 0
        %vm174 = vcmp.lt.s32.totalorder %v171, 12
        %v175 = vsel %vm174, %v171, 12
        %vm176 = vcmp.lt.s32.totalorder %v173, 12
        %v177 = vsel %vm176, %v173, 12
        %v178 = vadd.s32 %v175, 56
        %v179 = vadd.s32 %v177, 56
        %180 = vset.pattern.permute.xlu0 0
        %181 = vperm.xlu0 %180, %v178
        %v182 = vpop.permute.xlu0 %181
        %183 = vset.pattern.permute.xlu0 0
        %184 = vperm.xlu0 %183, %v179
        %v185 = vpop.permute.xlu0 %184
        %vm186 = vcmp.eq.s32.totalorder %v165, %v182
        %vm187 = vcmp.eq.s32.totalorder %v165, %v185
        %v188 = vsel %vm186, 1, 0
        %v189 = vsel %vm187, 1, 0
        %v190 = vcvt.s32.f32 %v188
        %v191 = vcvt.s32.f32 %v189
        %v192 = vmul.f32 %v162, 32.0
        %v193 = vmul.f32 %v163, 32.0
        %v194 = vcvt.f32.s32.to.zero.pseudo %v192
        %v195 = vcvt.f32.s32.to.zero.pseudo %v193
        %vm196 = vcmp.gt.s32.totalorder %v194, 0
        %v197 = vsel %vm196, %v194, 0
        %vm198 = vcmp.gt.s32.totalorder %v195, 0
        %v199 = vsel %vm198, %v195, 0
        %vm200 = vcmp.lt.s32.totalorder %v197, 31
        %v201 = vsel %vm200, %v197, 31
        %vm202 = vcmp.lt.s32.totalorder %v199, 31
        %v203 = vsel %vm202, %v199, 31
        %v204 = vadd.s32 %v201, 24
        %v205 = vadd.s32 %v203, 24
        %206 = vset.pattern.permute.xlu0 1
        %207 = vperm.xlu0 %206, %v204
        %v208 = vpop.permute.xlu0 %207
        %209 = vset.pattern.permute.xlu0 1
        %210 = vperm.xlu0 %209, %v205
        %v211 = vpop.permute.xlu0 %210
        %vm212 = vcmp.eq.s32.totalorder %v165, %v208
        %vm213 = vcmp.eq.s32.totalorder %v165, %v211
        %v214 = vsel %vm212, 1, 0
        %v215 = vsel %vm213, 1, 0
        %v216 = vcvt.s32.f32 %v214
        %v217 = vcvt.s32.f32 %v215
        %v218 = vadd.f32 %v190, %v216
        %v219 = vadd.f32 %v191, %v217
        %v220 = vmul.f32 %v162, 24.0
        %v221 = vmul.f32 %v163, 24.0
        %v222 = vcvt.f32.s32.to.zero.pseudo %v220
        %v223 = vcvt.f32.s32.to.zero.pseudo %v221
        %vm224 = vcmp.gt.s32.totalorder %v222, 0
        %v225 = vsel %vm224, %v222, 0
        %vm226 = vcmp.gt.s32.totalorder %v223, 0
        %v227 = vsel %vm226, %v223, 0
        %vm228 = vcmp.lt.s32.totalorder %v225, 23
        %v229 = vsel %vm228, %v225, 23
        %vm230 = vcmp.lt.s32.totalorder %v227, 23
        %v231 = vsel %vm230, %v227, 23
        %232 = vset.pattern.permute.xlu0 2
        %233 = vperm.xlu0 %232, %v229
        %v234 = vpop.permute.xlu0 %233
        %235 = vset.pattern.permute.xlu0 2
        %236 = vperm.xlu0 %235, %v231
        %v237 = vpop.permute.xlu0 %236
        %vm238 = vcmp.eq.s32.totalorder %v165, %v234
        %vm239 = vcmp.eq.s32.totalorder %v165, %v237
        %v240 = vsel %vm238, 1, 0
        %v241 = vsel %vm239, 1, 0
        %v242 = vcvt.s32.f32 %v240
        %v243 = vcvt.s32.f32 %v241
        %v244 = vadd.f32 %v218, %v242
        %v245 = vadd.f32 %v219, %v243
        %v246 = vld [vmem:[#allocation2] sm:$0xff]
        %v247 = vld [vmem:[#allocation2 + $0x8] sm:$0xff]
        %v248 = vld [vmem:[#allocation2 + $0x10] sm:$0xff]
        %v249 = vld [vmem:[#allocation2 + $0x18] sm:$0xff]
        %v250 = vld [vmem:[#allocation2 + $0x20] sm:$0xff]
        %v251 = vld [vmem:[#allocation2 + $0x28] sm:$0xff]
        %v252 = vld [vmem:[#allocation2 + $0x30] sm:$0xff]
        %v253 = vld [vmem:[#allocation2 + $0x38] sm:$0xff]
        %v254 = vld [vmem:[#allocation2 + $0x40] sm:$0xff]
        %v255 = vld [vmem:[#allocation2 + $0x48] sm:$0xff]
        %v256 = vld [vmem:[#allocation2 + $0x50] sm:$0xff]
        %v257 = vld [vmem:[#allocation2 + $0x58] sm:$0xff]
        %v258 = vld [vmem:[#allocation2 + $0x60] sm:$0xff]
        %v259 = vld [vmem:[#allocation2 + $0x68] sm:$0xff]
        %v260 = vld [vmem:[#allocation2 + $0x70] sm:$0xff]
        %v261 = vld [vmem:[#allocation2 + $0x78] sm:$0xff]
        %262 = vset.pattern.permute.xlu0 3
        %263 = vperm.xlu0 %262, %v178
        %v264 = vpop.permute.xlu0 %263
        %265 = vset.pattern.permute.xlu0 3
        %266 = vperm.xlu0 %265, %v179
        %v267 = vpop.permute.xlu0 %266
        %vm268 = vcmp.eq.s32.totalorder %v165, %v264
        %vm269 = vcmp.eq.s32.totalorder %v165, %v267
        %v270 = vsel %vm268, 1, 0
        %v271 = vsel %vm269, 1, 0
        %v272 = vcvt.s32.f32 %v270
        %v273 = vcvt.s32.f32 %v271
        %274 = vset.pattern.permute.xlu0 4
        %275 = vperm.xlu0 %274, %v204
        %v276 = vpop.permute.xlu0 %275
        %277 = vset.pattern.permute.xlu0 4
        %278 = vperm.xlu0 %277, %v205
        %v279 = vpop.permute.xlu0 %278
        %vm280 = vcmp.eq.s32.totalorder %v165, %v276
        %vm281 = vcmp.eq.s32.totalorder %v165, %v279
        %v282 = vsel %vm280, 1, 0
        %v283 = vsel %vm281, 1, 0
        %v284 = vcvt.s32.f32 %v282
        %v285 = vcvt.s32.f32 %v283
        %v286 = vadd.f32 %v272, %v284
        %v287 = vadd.f32 %v273, %v285
        %288 = vset.pattern.permute.xlu0 5
        %289 = vperm.xlu0 %288, %v229
        %v290 = vpop.permute.xlu0 %289
        %291 = vset.pattern.permute.xlu0 5
        %292 = vperm.xlu0 %291, %v231
        %v293 = vpop.permute.xlu0 %292
        %vm294 = vcmp.eq.s32.totalorder %v165, %v290
        %vm295 = vcmp.eq.s32.totalorder %v165, %v293
        %v296 = vsel %vm294, 1, 0
        %v297 = vsel %vm295, 1, 0
        %v298 = vcvt.s32.f32 %v296
        %v299 = vcvt.s32.f32 %v297
        %v300 = vadd.f32 %v286, %v298
        %v301 = vadd.f32 %v287, %v299
        %s302 = scalar_lea.vmem [#allocation2], 128
        %v303 = vld [vmem:[%s302] sm:$0xff]
        %v304 = vld [vmem:[%s302 + $0x8] sm:$0xff]
        %v305 = vld [vmem:[%s302 + $0x10] sm:$0xff]
        %v306 = vld [vmem:[%s302 + $0x18] sm:$0xff]
        %v307 = vld [vmem:[%s302 + $0x20] sm:$0xff]
        %v308 = vld [vmem:[%s302 + $0x28] sm:$0xff]
        %v309 = vld [vmem:[%s302 + $0x30] sm:$0xff]
        %v310 = vld [vmem:[%s302 + $0x38] sm:$0xff]
        %v311 = vld [vmem:[%s302 + $0x40] sm:$0xff]
        %v312 = vld [vmem:[%s302 + $0x48] sm:$0xff]
        %v313 = vld [vmem:[%s302 + $0x50] sm:$0xff]
        %v314 = vld [vmem:[%s302 + $0x58] sm:$0xff]
        %v315 = vld [vmem:[%s302 + $0x60] sm:$0xff]
        %v316 = vld [vmem:[%s302 + $0x68] sm:$0xff]
        %v317 = vld [vmem:[%s302 + $0x70] sm:$0xff]
        %v318 = vld [vmem:[%s302 + $0x78] sm:$0xff]
        %319 = vmatpush.msra.mxu0 %v318
        %320 = vmatpush.msra.mxu0 %v317
        %321 = vmatpush.msra.mxu0 %v316
        %322 = vmatpush.msra.mxu0 %v315
        %323 = vmatpush.msra.mxu0 %v314
        %324 = vmatpush.msra.mxu0 %v313
        %325 = vmatpush.msra.mxu0 %v312
        %326 = vmatpush.msra.mxu0 %v311
        %327 = vmatpush.msra.mxu0 %v310
        %328 = vmatpush.msra.mxu0 %v309
        %329 = vmatpush.msra.mxu0 %v308
        %330 = vmatpush.msra.mxu0 %v307
        %331 = vmatpush.msra.mxu0 %v306
        %332 = vmatpush.msra.mxu0 %v305
        %333 = vmatpush.msra.mxu0 %v304
        %334 = vmatpush.msra.mxu0 %v303
        %335 = vmatmul.f32.gmra.mxu0 %v300
        %v336 = vpop.f32.mrf.mxu0
        %v337 = vadd.f32 0.0, %v336
        %338 = vmatmul.f32.gmra.mxu0 %v301
        %v339 = vpop.f32.mrf.mxu0
        %v340 = vadd.f32 0.0, %v339
        %341 = vdwg.mxu0
        %342 = vmatpush.msra.mxu0 %v261
        %343 = vmatpush.msra.mxu0 %v260
        %344 = vmatpush.msra.mxu0 %v259
        %345 = vmatpush.msra.mxu0 %v258
        %346 = vmatpush.msra.mxu0 %v257
        %347 = vmatpush.msra.mxu0 %v256
        %348 = vmatpush.msra.mxu0 %v255
        %349 = vmatpush.msra.mxu0 %v254
        %350 = vmatpush.msra.mxu0 %v253
        %351 = vmatpush.msra.mxu0 %v252
        %352 = vmatpush.msra.mxu0 %v251
        %353 = vmatpush.msra.mxu0 %v250
        %354 = vmatpush.msra.mxu0 %v249
        %355 = vmatpush.msra.mxu0 %v248
        %356 = vmatpush.msra.mxu0 %v247
        %357 = vmatpush.msra.mxu0 %v246
        %358 = vmatmul.f32.gmra.mxu0 %v244
        %v359 = vpop.f32.mrf.mxu0
        %v360 = vadd.f32 %v337, %v359
        %361 = vmatmul.f32.gmra.mxu0 %v245
        %v362 = vpop.f32.mrf.mxu0
        %v363 = vadd.f32 %v340, %v362
        %364 = vdwg.mxu0
        %365 = vset.pattern.permute.xlu0 6
        %366 = vperm.xlu0 %365, %v178
        %v367 = vpop.permute.xlu0 %366
        %368 = vset.pattern.permute.xlu0 6
        %369 = vperm.xlu0 %368, %v179
        %v370 = vpop.permute.xlu0 %369
        %vm371 = vcmp.eq.s32.totalorder %v165, %v367
        %vm372 = vcmp.eq.s32.totalorder %v165, %v370
        %v373 = vsel %vm371, 1, 0
        %v374 = vsel %vm372, 1, 0
        %v375 = vcvt.s32.f32 %v373
        %v376 = vcvt.s32.f32 %v374
        %377 = vset.pattern.permute.xlu0 7
        %378 = vperm.xlu0 %377, %v204
        %v379 = vpop.permute.xlu0 %378
        %380 = vset.pattern.permute.xlu0 7
        %381 = vperm.xlu0 %380, %v205
        %v382 = vpop.permute.xlu0 %381
        %vm383 = vcmp.eq.s32.totalorder %v165, %v379
        %vm384 = vcmp.eq.s32.totalorder %v165, %v382
        %v385 = vsel %vm383, 1, 0
        %v386 = vsel %vm384, 1, 0
        %v387 = vcvt.s32.f32 %v385
        %v388 = vcvt.s32.f32 %v386
        %v389 = vadd.f32 %v375, %v387
        %v390 = vadd.f32 %v376, %v388
        %391 = vset.pattern.permute.xlu0 8
        %392 = vperm.xlu0 %391, %v229
        %v393 = vpop.permute.xlu0 %392
        %394 = vset.pattern.permute.xlu0 8
        %395 = vperm.xlu0 %394, %v231
        %v396 = vpop.permute.xlu0 %395
        %vm397 = vcmp.eq.s32.totalorder %v165, %v393
        %vm398 = vcmp.eq.s32.totalorder %v165, %v396
        %v399 = vsel %vm397, 1, 0
        %v400 = vsel %vm398, 1, 0
        %v401 = vcvt.s32.f32 %v399
        %v402 = vcvt.s32.f32 %v400
        %v403 = vadd.f32 %v389, %v401
        %v404 = vadd.f32 %v390, %v402
        %s405 = scalar_lea.vmem [#allocation2], 256
        %v406 = vld [vmem:[%s405] sm:$0xff]
        %v407 = vld [vmem:[%s405 + $0x8] sm:$0xff]
        %v408 = vld [vmem:[%s405 + $0x10] sm:$0xff]
        %v409 = vld [vmem:[%s405 + $0x18] sm:$0xff]
        %v410 = vld [vmem:[%s405 + $0x20] sm:$0xff]
        %v411 = vld [vmem:[%s405 + $0x28] sm:$0xff]
        %v412 = vld [vmem:[%s405 + $0x30] sm:$0xff]
        %v413 = vld [vmem:[%s405 + $0x38] sm:$0xff]
        %v414 = vld [vmem:[%s405 + $0x40] sm:$0xff]
        %v415 = vld [vmem:[%s405 + $0x48] sm:$0xff]
        %v416 = vld [vmem:[%s405 + $0x50] sm:$0xff]
        %v417 = vld [vmem:[%s405 + $0x58] sm:$0xff]
        %v418 = vld [vmem:[%s405 + $0x60] sm:$0xff]
        %v419 = vld [vmem:[%s405 + $0x68] sm:$0xff]
        %v420 = vld [vmem:[%s405 + $0x70] sm:$0xff]
        %v421 = vld [vmem:[%s405 + $0x78] sm:$0xff]
        %422 = vmatpush.msra.mxu0 %v421
        %423 = vmatpush.msra.mxu0 %v420
        %424 = vmatpush.msra.mxu0 %v419
        %425 = vmatpush.msra.mxu0 %v418
        %426 = vmatpush.msra.mxu0 %v417
        %427 = vmatpush.msra.mxu0 %v416
        %428 = vmatpush.msra.mxu0 %v415
        %429 = vmatpush.msra.mxu0 %v414
        %430 = vmatpush.msra.mxu0 %v413
        %431 = vmatpush.msra.mxu0 %v412
        %432 = vmatpush.msra.mxu0 %v411
        %433 = vmatpush.msra.mxu0 %v410
        %434 = vmatpush.msra.mxu0 %v409
        %435 = vmatpush.msra.mxu0 %v408
        %436 = vmatpush.msra.mxu0 %v407
        %437 = vmatpush.msra.mxu0 %v406
        %438 = vmatmul.f32.gmra.mxu0 %v403
        %v439 = vpop.f32.mrf.mxu0
        %v440 = vadd.f32 0.0, %v439
        %441 = vmatmul.f32.gmra.mxu0 %v404
        %v442 = vpop.f32.mrf.mxu0
        %v443 = vadd.f32 0.0, %v442
        %444 = vdwg.mxu0
        %v445 = vadd.f32 %v360, %v440
        %v446 = vadd.f32 %v363, %v443
        %447 = vset.pattern.permute.xlu0 9
        %448 = vperm.xlu0 %447, %v178
        %v449 = vpop.permute.xlu0 %448
        %450 = vset.pattern.permute.xlu0 9
        %451 = vperm.xlu0 %450, %v179
        %v452 = vpop.permute.xlu0 %451
        %vm453 = vcmp.eq.s32.totalorder %v165, %v449
        %vm454 = vcmp.eq.s32.totalorder %v165, %v452
        %v455 = vsel %vm453, 1, 0
        %v456 = vsel %vm454, 1, 0
        %v457 = vcvt.s32.f32 %v455
        %v458 = vcvt.s32.f32 %v456
        %459 = vset.pattern.permute.xlu0 10
        %460 = vperm.xlu0 %459, %v204
        %v461 = vpop.permute.xlu0 %460
        %462 = vset.pattern.permute.xlu0 10
        %463 = vperm.xlu0 %462, %v205
        %v464 = vpop.permute.xlu0 %463
        %vm465 = vcmp.eq.s32.totalorder %v165, %v461
        %vm466 = vcmp.eq.s32.totalorder %v165, %v464
        %v467 = vsel %vm465, 1, 0
        %v468 = vsel %vm466, 1, 0
        %v469 = vcvt.s32.f32 %v467
        %v470 = vcvt.s32.f32 %v468
        %v471 = vadd.f32 %v457, %v469
        %v472 = vadd.f32 %v458, %v470
        %473 = vset.pattern.permute.xlu0 11
        %474 = vperm.xlu0 %473, %v229
        %v475 = vpop.permute.xlu0 %474
        %476 = vset.pattern.permute.xlu0 11
        %477 = vperm.xlu0 %476, %v231
        %v478 = vpop.permute.xlu0 %477
        %vm479 = vcmp.eq.s32.totalorder %v165, %v475
        %vm480 = vcmp.eq.s32.totalorder %v165, %v478
        %v481 = vsel %vm479, 1, 0
        %v482 = vsel %vm480, 1, 0
        %v483 = vcvt.s32.f32 %v481
        %v484 = vcvt.s32.f32 %v482
        %v485 = vadd.f32 %v471, %v483
        %v486 = vadd.f32 %v472, %v484
        %s487 = scalar_lea.vmem [#allocation2], 384
        %v488 = vld [vmem:[%s487] sm:$0xff]
        %v489 = vld [vmem:[%s487 + $0x8] sm:$0xff]
        %v490 = vld [vmem:[%s487 + $0x10] sm:$0xff]
        %v491 = vld [vmem:[%s487 + $0x18] sm:$0xff]
        %v492 = vld [vmem:[%s487 + $0x20] sm:$0xff]
        %v493 = vld [vmem:[%s487 + $0x28] sm:$0xff]
        %v494 = vld [vmem:[%s487 + $0x30] sm:$0xff]
        %v495 = vld [vmem:[%s487 + $0x38] sm:$0xff]
        %v496 = vld [vmem:[%s487 + $0x40] sm:$0xff]
        %v497 = vld [vmem:[%s487 + $0x48] sm:$0xff]
        %v498 = vld [vmem:[%s487 + $0x50] sm:$0xff]
        %v499 = vld [vmem:[%s487 + $0x58] sm:$0xff]
        %v500 = vld [vmem:[%s487 + $0x60] sm:$0xff]
        %v501 = vld [vmem:[%s487 + $0x68] sm:$0xff]
        %v502 = vld [vmem:[%s487 + $0x70] sm:$0xff]
        %v503 = vld [vmem:[%s487 + $0x78] sm:$0xff]
        %504 = vmatpush.msra.mxu0 %v503
        %505 = vmatpush.msra.mxu0 %v502
        %506 = vmatpush.msra.mxu0 %v501
        %507 = vmatpush.msra.mxu0 %v500
        %508 = vmatpush.msra.mxu0 %v499
        %509 = vmatpush.msra.mxu0 %v498
        %510 = vmatpush.msra.mxu0 %v497
        %511 = vmatpush.msra.mxu0 %v496
        %512 = vmatpush.msra.mxu0 %v495
        %513 = vmatpush.msra.mxu0 %v494
        %514 = vmatpush.msra.mxu0 %v493
        %515 = vmatpush.msra.mxu0 %v492
        %516 = vmatpush.msra.mxu0 %v491
        %517 = vmatpush.msra.mxu0 %v490
        %518 = vmatpush.msra.mxu0 %v489
        %519 = vmatpush.msra.mxu0 %v488
        %520 = vmatmul.f32.gmra.mxu0 %v485
        %v521 = vpop.f32.mrf.mxu0
        %v522 = vadd.f32 0.0, %v521
        %523 = vmatmul.f32.gmra.mxu0 %v486
        %v524 = vpop.f32.mrf.mxu0
        %v525 = vadd.f32 0.0, %v524
        %526 = vdwg.mxu0
        %v527 = vadd.f32 %v445, %v522
        %v528 = vadd.f32 %v446, %v525
        %529 = vst [vmem:[%s154] sm:$0xff] %v527
        %530 = vst [vmem:[%s154 + $0x8] sm:$0xff] %v528
        %s531 = sand.u32 %s72, 1
        %s532 = scalar_lea.sflag [#allocation4], %s531
        %s533 = sand.u32 %s72, 1
        %s534 = smul.addr %s533, 16
        %s535 = scalar_lea.vmem [#allocation5], %s534
        // Predicated region
        $region33: #{tpu_custom_call.1} parent=27 // pred_check
          %p536 = pneg %p82
        $region34: #{tpu_custom_call.1} parent=27 // pred_check_branch
          %538 = sbr.rel (%p536) target = $region36
        $region35: #{tpu_custom_call.1} parent=27 // pred_region
          %s539 = smul.u32 2, %s17
          %541 = vsyncadd %s532, 0
          %s542 = smul.addr %s539, 8
          %s543 = scalar_lea.hbm %s2, %s542
          %s544 = sshll.u32 %s535, 4
          %s545 = int_to_ptr.vmem [resolvable:$true] %s544
          %s546 = sshll.u32 %s543, 4
          %s547 = int_to_ptr.hbm [resolvable:$true] %s546
          %552 = dma.vmem_to_hbm [thread:$0]  %s545, 256, %s547, %s532, 128, 128, 8
        $region36: #{tpu_custom_call.1} parent=27 // pred_fallthru
          _
      $region28: #{tpu_custom_call.1} parent=5 // pred_fallthru
        _
      %p553 = scmp.le.s32.totalorder 2, %s12
      // Predicated region
      $region37: #{tpu_custom_call.1} parent=5 // pred_check
        %p554 = pneg %p553
      $region38: #{tpu_custom_call.1} parent=5 // pred_check_branch
        %556 = sbr.rel (%p554) target = $region40
      $region39: #{tpu_custom_call.1} parent=5 // pred_region
        %s557 = ssub.s32 %s12, 2
        // Predicated region
        $region41: #{tpu_custom_call.1} parent=39 // pred_check
          %p558 = pneg %p88
        $region42: #{tpu_custom_call.1} parent=39 // pred_check_branch
          %560 = sbr.rel (%p558) target = $region44
        $region43: #{tpu_custom_call.1} parent=39 // pred_region
          %s561 = sand.u32 %s73, 1
          %s562 = scalar_lea.sflag [#allocation4], %s561
          %s563 = sand.u32 %s73, 1
          %s564 = smul.addr %s563, 16
          %s565 = scalar_lea.vmem [#allocation5], %s564
          %567 = dma.done %s562, 256
        $region44: #{tpu_custom_call.1} parent=39 // pred_fallthru
          _
      $region40: #{tpu_custom_call.1} parent=5 // pred_fallthru
        _
    $region6: #{tpu_custom_call.1} parent=1 // loop_footer
      %s16 = sadd.s32 1, %s12
    $region7: #{tpu_custom_call.1} parent=1 // loop_footer_branch
      %11 = sbr.rel target = $region3
    $region8: #{tpu_custom_call.1} parent=1 // loop_exit
      _
    %568 = vsyncpa [#allocation3], 1
    %s569 = scalar_lea.sflag [#allocation3], 1
    %570 = vsyncpa %s569, 1
    %571 = vsyncpa [#allocation4], 1
    %s572 = scalar_lea.sflag [#allocation4], 1
    %573 = vsyncpa %s572, 1

</llo_original>
